<compile_context>
chip_gen: v7x
topology: tpu7x:2x2x1
jax: 0.10.0
libtpu: 0.0.40
codegen_flags: <defaults>
</compile_context>

<pallas_src>
import jax
import jax.numpy as jnp
from jax.experimental import pallas as pl
from jax.experimental.pallas import tpu as pltpu


def _round_up(n, m):
    return ((n + m - 1) // m) * m


def _vmem_budget_and_limit():
    """Generation-aware (budget_for_tiling, vmem_limit_bytes)."""
    cap = 64 * 1024 * 1024                     # conservative fallback (v7x-sized VMEM)
    try:
        info = pltpu.get_tpu_info()
        cap = int(getattr(info, "vmem_capacity_bytes", cap))
    except Exception:
        pass
    # Leave headroom for compiler scratch; cap the scoped limit at 96 MiB.
    limit = max(32 * 1024 * 1024, min(cap - 16 * 1024 * 1024, 96 * 1024 * 1024))
    budget = (limit * 3) // 4
    return budget, limit


def _pick_batch_tile(B, D, C, x_dtype, budget_bytes, n_split):
    """Largest useful batch tile (multiple of 8), D-aware and VMEM-safe."""
    x_bytes = jnp.dtype(x_dtype).itemsize
    row_bytes = D * x_bytes
    # D-aware target: ~4 MiB of x per grid step keeps the ~0.35us fixed
    # per-step overhead small vs. the per-step HBM time on all generations.
    tb = max(8, (4 * 1024 * 1024) // row_bytes)
    # VMEM-fit check: double-buffered x + lane-dense labels streams, f32
    # in-kernel working set (x^2 temp + a few (C, TB) temps), resident centers.
    c_pad = _round_up(C, 8)
    per_row = 2 * (row_bytes + 4) + 2 * D * 4 + 6 * c_pad * 4
    resident = 4 * c_pad * max(D, 128) * 4
    fit = max(8, (budget_bytes - resident) // per_row)
    tb = min(tb, fit)
    tb = min(tb, _round_up(-(-B // n_split), 8))   # no more than one core's rows
    return max(8, (tb // 8) * 8)


def _island_center_kernel(x_ref, lab_ref, c_ref, csq_ref, out_ref):
    step = pl.program_id(1)

    @pl.when(step == 0)
    def _init():
        out_ref[...] = jnp.zeros_like(out_ref)

    x = x_ref[...]                       # (TB, D) streamed tile
    c = c_ref[...]                       # (C, D) resident centers
    lab = lab_ref[0]                     # (1, TB) int32, lane-dense labels
    csq = csq_ref[...]                   # (C, 1) f32, precomputed ||c_i||^2

    tb, d = x.shape
    ncls = c.shape[0]

    xf = x.astype(jnp.float32)
    cf = c.astype(jnp.float32)

    nt = (((1,), (1,)), ((), ()))        # contract last dims of both (NT form)

    # c_i . x_n, lane-dense (C, TB) straight off the MXU (no transposed copies).
    cx = jax.lax.dot_general(cf, xf, nt,
                             preferred_element_type=jnp.float32)      # (C, TB)

    # ||x_n||^2 as a lane-dense (1, TB) row via a 1-row MXU matmul (avoids a
    # (TB,1)->(1,TB) cross-layout transpose).
    ones_row = jnp.ones((1, d), jnp.float32)
    xsq = jax.lax.dot_general(ones_row, xf * xf, nt,
                              preferred_element_type=jnp.float32)     # (1, TB)

    distmat = csq + xsq - 2.0 * cx                                    # (C, TB)

    classes = jax.lax.broadcasted_iota(jnp.int32, (ncls, tb), 0)
    mask = (lab == classes).astype(jnp.float32)                       # (C, TB)
    dist = jnp.clip(distmat * mask, 1e-12, 1e12)

    # Padded columns (x == 0, label == -1) contribute exactly C * 1e-12 each;
    # the wrapper subtracts that constant once instead of masking every step.
    partial = jnp.sum(jnp.sum(dist, axis=1, keepdims=True),
                      axis=0, keepdims=True)                          # (1, 1)
    out_ref[...] += partial.reshape(1, 1, 1)


def island_loss(x, labels, centers, lambda_island=10.0, block_b=None):
    """x: (B, D) float, labels: (B,) int, centers: (C, D) float -> scalar f32 loss."""
    B, D = x.shape
    C, Dc = centers.shape
    assert D == Dc, (D, Dc)

    # Two-way batch split: uses both TensorCores on v7x; on v5e/v6e (1 TC) it
    # is just one extra sequential grid step.
    n_split = 2

    budget, vmem_limit = _vmem_budget_and_limit()
    if block_b is None:
        block_b = _pick_batch_tile(B, D, C, x.dtype, budget, n_split)
    block_b = max(8, (int(block_b) // 8) * 8)

    Bp = _round_up(B, n_split * block_b)
    pad = Bp - B

    labels_i = labels.astype(jnp.int32)
    if pad:
        x = jnp.pad(x, ((0, pad), (0, 0)))
        labels_i = jnp.pad(labels_i, (0, pad), constant_values=-1)

    nb_total = Bp // block_b
    nb_inner = nb_total // n_split

    # Lane-dense labels: each grid step streams one 128-lane-packed row instead
    # of a sublane-strided (block_b, 1) block.
    labels3d = labels_i.reshape(nb_total, 1, block_b)

    cf = centers.astype(jnp.float32)
    csq = jnp.sum(cf * cf, axis=1, keepdims=True)                    # (C, 1)

    out = pl.pallas_call(
        _island_center_kernel,
        out_shape=jax.ShapeDtypeStruct((n_split, 1, 1), jnp.float32),
        grid_spec=pltpu.PrefetchScalarGridSpec(
            num_scalar_prefetch=0,
            grid=(n_split, nb_inner),
            in_specs=[
                pl.BlockSpec((block_b, D),
                             lambda p, i: (p * nb_inner + i, 0)),     # streamed x
                pl.BlockSpec((1, 1, block_b),
                             lambda p, i: (p * nb_inner + i, 0, 0)),  # lane-dense labels
                pl.BlockSpec((C, D), lambda p, i: (0, 0)),            # resident centers
                pl.BlockSpec((C, 1), lambda p, i: (0, 0)),            # resident ||c||^2
            ],
            out_specs=pl.BlockSpec((1, 1, 1),
                                   lambda p, i: (p, 0, 0)),           # per-core accumulator
        ),
        compiler_params=pltpu.CompilerParams(
            dimension_semantics=("parallel", "arbitrary"),
            vmem_limit_bytes=int(vmem_limit)),
    )(x, labels3d, centers, csq)

    # Per-core partials -> center loss; remove the padded rows' clip floor, /B.
    center_sum = jnp.sum(out) - float(pad * C) * 1e-12
    center_loss = center_sum / float(B)

    # Island term: centers-only O(C^2 D) work in plain XLA, matching the
    # reference denominator (||ci||*||cj|| + 1e-12) and fill_diagonal_(0).
    hp = jax.lax.Precision.HIGHEST
    norm_c = jnp.sqrt(jnp.sum(cf * cf, axis=1, keepdims=True))
    cos = jnp.dot(cf, cf.T, precision=hp) / (norm_c @ norm_c.T + 1e-12)
    cos = cos * (1.0 - jnp.eye(C, dtype=jnp.float32))
    island = jnp.sum(cos + 1.0)

    return center_loss + float(lambda_island) * island


def island_loss_ref(x, labels, centers, lambda_island=10.0):
    """Pure-JAX reference matching the PyTorch forward."""
    B = x.shape[0]
    C = centers.shape[0]
    hp = jax.lax.Precision.HIGHEST
    distmat = (jnp.sum(x ** 2, axis=1, keepdims=True)
               + jnp.sum(centers ** 2, axis=1, keepdims=True).T
               - 2.0 * jnp.dot(x, centers.T, precision=hp))
    mask = (labels[:, None] == jnp.arange(C)[None, :]).astype(jnp.float32)
    dist = distmat * mask
    center_loss = jnp.sum(jnp.clip(dist, 1e-12, 1e12)) / B
    norm_c = jnp.linalg.norm(centers, axis=1, keepdims=True)
    cos = jnp.dot(centers, centers.T, precision=hp) / (norm_c @ norm_c.T + 1e-12)
    cos = cos * (1.0 - jnp.eye(C))
    island = jnp.sum(cos + 1.0)
    return center_loss + lambda_island * island


if __name__ == "__main__":
    key = jax.random.PRNGKey(0)
    k1, k2, k3 = jax.random.split(key, 3)

    batch = 200          # deliberately not a multiple of the tile -> exercises padding
    feat_dim = 128
    num_classes = 6      # stand-in for utils.get_domains_and_labels(args)
    lambda_island = 10.0

    x = jax.random.normal(k1, (batch, feat_dim), dtype=jnp.float32)
    labels = jax.random.randint(k2, (batch,), 0, num_classes, dtype=jnp.int32)
    centers = jax.random.normal(k3, (num_classes, feat_dim), dtype=jnp.float32)

    ref = island_loss_ref(x, labels, centers, lambda_island)

    # Multi-tile path: grid=(2, 2), per-core resident accumulators, padding.
    loss_tiled = jax.block_until_ready(
        island_loss(x, labels, centers, lambda_island, block_b=64))
    assert jnp.allclose(loss_tiled, ref, rtol=1e-5, atol=1e-4), (loss_tiled, ref)

    # Auto-tiled path (one D-aware tile per core for this small batch).
    loss_auto = jax.block_until_ready(
        island_loss(x, labels, centers, lambda_island))
    assert jnp.allclose(loss_auto, ref, rtol=1e-5, atol=1e-4), (loss_auto, ref)

    print("KERNEL_OK")
</pallas_src>

<mosaic_0001>
module attributes {stable_mosaic.version = 11 : i64} {
  func.func @_island_center_kernel(%arg0: i32, %arg1: i32, %arg2: memref<64x128xf32, #tpu.memory_space<vmem>>, %arg3: memref<1x1x64xi32, #tpu.memory_space<vmem>>, %arg4: memref<6x128xf32, #tpu.memory_space<vmem>>, %arg5: memref<6x1xf32, #tpu.memory_space<vmem>>, %arg6: memref<1x1x1xf32, #tpu.memory_space<vmem>>) attributes {dimension_semantics = [#tpu.dimension_semantics<parallel>, #tpu.dimension_semantics<arbitrary>], iteration_bounds = array<i64: 2, 2>, scalar_prefetch = 0 : i64, scratch_operands = 0 : i64, tpu.core_type = #tpu.core_type<tc>, window_params = [{transform_indices = @transform_0, window_bounds = array<i64: 64, 128>}, {transform_indices = @transform_1, window_bounds = array<i64: 1, 1, 64>}, {pipeline_mode = #tpu.pipeline_mode<synchronous>, transform_indices = @transform_2, window_bounds = array<i64: 6, 128>}, {pipeline_mode = #tpu.pipeline_mode<synchronous>, transform_indices = @transform_3, window_bounds = array<i64: 6, 1>}, {transform_indices = @transform_4, window_bounds = array<i64: 1, 1, 1>}]} {
    %c0_i32 = arith.constant 0 : i32
    %0 = arith.cmpi eq, %arg1, %c0_i32 : i32
    %1 = arith.extui %0 : i1 to i32
    %c0_i32_0 = arith.constant 0 : i32
    %2 = arith.cmpi ne, %1, %c0_i32_0 : i32
    scf.if %2 {
      %cst_22 = arith.constant 0.000000e+00 : f32
      %36 = vector.broadcast %cst_22 : f32 to vector<1x1x1xf32>
      %c0_23 = arith.constant 0 : index
      %c0_24 = arith.constant 0 : index
      %c0_25 = arith.constant 0 : index
      %37 = vector.load %arg6[%c0_23, %c0_24, %c0_25] : memref<1x1x1xf32, #tpu.memory_space<vmem>>, vector<1x1x1xf32>
      tpu.vector_store %arg6[%c0_23, %c0_24, %c0_25], %36 {strides = array<i32>} : memref<1x1x1xf32, #tpu.memory_space<vmem>>, vector<1x1x1xf32>,
    } else {
    }
    %c0 = arith.constant 0 : index
    %c0_1 = arith.constant 0 : index
    %3 = vector.load %arg2[%c0, %c0_1] : memref<64x128xf32, #tpu.memory_space<vmem>>, vector<64x128xf32>
    %c0_2 = arith.constant 0 : index
    %c0_3 = arith.constant 0 : index
    %4 = vector.load %arg4[%c0_2, %c0_3] : memref<6x128xf32, #tpu.memory_space<vmem>>, vector<6x128xf32>
    %c0_4 = arith.constant 0 : index
    %c0_5 = arith.constant 0 : index
    %c0_6 = arith.constant 0 : index
    %5 = vector.load %arg3[%c0_4, %c0_5, %c0_6] : memref<1x1x64xi32, #tpu.memory_space<vmem>>, vector<1x1x64xi32>
    %6 = vector.shape_cast %5 : vector<1x1x64xi32> to vector<1x64xi32>
    %c0_7 = arith.constant 0 : index
    %c0_8 = arith.constant 0 : index
    %7 = vector.load %arg5[%c0_7, %c0_8] : memref<6x1xf32, #tpu.memory_space<vmem>>, vector<6x1xf32>
    %cst = arith.constant dense<0.000000e+00> : vector<6x64xf32>
    %8 = tpu.matmul %4, %3, %cst {dimension_numbers = #tpu.dot_dimension_numbers<[1], [1], [0], [0], [0, 0, 1, 0], [], []>} : vector<6x128xf32>, vector<64x128xf32>, vector<6x64xf32> -> vector<6x64xf32>
    %cst_9 = arith.constant 1.000000e+00 : f32
    %9 = vector.broadcast %cst_9 : f32 to vector<1x128xf32>
    %10 = arith.mulf %3, %3 : vector<64x128xf32>
    %cst_10 = arith.constant dense<0.000000e+00> : vector<1x64xf32>
    %11 = tpu.matmul %9, %10, %cst_10 {dimension_numbers = #tpu.dot_dimension_numbers<[1], [1], [0], [0], [0, 0, 1, 0], [], []>} : vector<1x128xf32>, vector<64x128xf32>, vector<1x64xf32> -> vector<1x64xf32>
    %12 = vector.broadcast %7 : vector<6x1xf32> to vector<6x64xf32>
    %13 = vector.broadcast %11 : vector<1x64xf32> to vector<6x64xf32>
    %14 = arith.addf %12, %13 : vector<6x64xf32>
    %cst_11 = arith.constant 2.000000e+00 : f32
    %15 = vector.broadcast %cst_11 : f32 to vector<6x64xf32>
    %16 = arith.mulf %15, %8 : vector<6x64xf32>
    %17 = arith.subf %14, %16 : vector<6x64xf32>
    %18 = tpu.iota {dimensions = array<i32: 0>} : vector<6x64xi32>
    %19 = vector.broadcast %6 : vector<1x64xi32> to vector<6x64xi32>
    %20 = arith.cmpi eq, %19, %18 : vector<6x64xi32>
    %21 = arith.extui %20 : vector<6x64xi1> to vector<6x64xi32>
    %22 = arith.sitofp %21 : vector<6x64xi32> to vector<6x64xf32>
    %23 = arith.mulf %17, %22 : vector<6x64xf32>
    %cst_12 = arith.constant 9.99999996E-13 : f32
    %cst_13 = arith.constant 9.99999995E+11 : f32
    %24 = vector.broadcast %cst_12 : f32 to vector<6x64xf32>
    %25 = arith.maximumf %24, %23 : vector<6x64xf32>
    %26 = vector.broadcast %cst_13 : f32 to vector<6x64xf32>
    %27 = arith.minimumf %26, %25 : vector<6x64xf32>
    %cst_14 = arith.constant dense<0.000000e+00> : vector<6xf32>
    %28 = vector.multi_reduction <add>, %27, %cst_14 [1] : vector<6x64xf32> to vector<6xf32>
    %29 = vector.shape_cast %28 : vector<6xf32> to vector<6x1xf32>
    %cst_15 = arith.constant dense<0.000000e+00> : vector<1xf32>
    %30 = vector.multi_reduction <add>, %29, %cst_15 [0] : vector<6x1xf32> to vector<1xf32>
    %31 = vector.shape_cast %30 : vector<1xf32> to vector<1x1xf32>
    %c0_16 = arith.constant 0 : index
    %c0_17 = arith.constant 0 : index
    %c0_18 = arith.constant 0 : index
    %32 = vector.load %arg6[%c0_16, %c0_17, %c0_18] : memref<1x1x1xf32, #tpu.memory_space<vmem>>, vector<1x1x1xf32>
    %33 = vector.shape_cast %31 : vector<1x1xf32> to vector<1x1x1xf32>
    %34 = arith.addf %32, %33 : vector<1x1x1xf32>
    %c0_19 = arith.constant 0 : index
    %c0_20 = arith.constant 0 : index
    %c0_21 = arith.constant 0 : index
    %35 = vector.load %arg6[%c0_19, %c0_20, %c0_21] : memref<1x1x1xf32, #tpu.memory_space<vmem>>, vector<1x1x1xf32>
    tpu.vector_store %arg6[%c0_19, %c0_20, %c0_21], %34 {strides = array<i32>} : memref<1x1x1xf32, #tpu.memory_space<vmem>>, vector<1x1x1xf32>,
    return
  }
  func.func @transform_0(%arg0: i32, %arg1: i32) -> (i32, i32) {
    %c2_i32 = arith.constant 2 : i32
    %0 = arith.muli %arg0, %c2_i32 : i32
    %1 = arith.addi %0, %arg1 : i32
    %c0_i32 = arith.constant 0 : i32
    %c0_i32_0 = arith.constant 0 : i32
    return %1, %c0_i32 : i32, i32
  }
  func.func @transform_1(%arg0: i32, %arg1: i32) -> (i32, i32, i32) {
    %c2_i32 = arith.constant 2 : i32
    %0 = arith.muli %arg0, %c2_i32 : i32
    %1 = arith.addi %0, %arg1 : i32
    %c0_i32 = arith.constant 0 : i32
    %c0_i32_0 = arith.constant 0 : i32
    %c0_i32_1 = arith.constant 0 : i32
    return %1, %c0_i32, %c0_i32_0 : i32, i32, i32
  }
  func.func @transform_2(%arg0: i32, %arg1: i32) -> (i32, i32) {
    %c0_i32 = arith.constant 0 : i32
    %c0_i32_0 = arith.constant 0 : i32
    %c0_i32_1 = arith.constant 0 : i32
    return %c0_i32, %c0_i32_0 : i32, i32
  }
  func.func @transform_3(%arg0: i32, %arg1: i32) -> (i32, i32) {
    %c0_i32 = arith.constant 0 : i32
    %c0_i32_0 = arith.constant 0 : i32
    %c0_i32_1 = arith.constant 0 : i32
    return %c0_i32, %c0_i32_0 : i32, i32
  }
  func.func @transform_4(%arg0: i32, %arg1: i32) -> (i32, i32, i32) {
    %c0_i32 = arith.constant 0 : i32
    %c0_i32_0 = arith.constant 0 : i32
    %c0_i32_1 = arith.constant 0 : i32
    return %arg0, %c0_i32, %c0_i32_0 : i32, i32, i32
  }
}

</mosaic_0001>

<llo_original>
// kernel: tpu_custom_call.1
$region0: #{tpu_custom_call.1}
  #allocation0 [shape = 'u32[]', space=smem, size = 0x4, offset = 0x4, fixed_abs, tag = 'smem constant byte address 0x4 - core index']
  #allocation1 [shape = 'u32[144,128]{1,0:T(1,128)}', space=vmem, size = 0x12000, scoped, tag = 'internal scratch']
  %s0 = inlined_call_operand.hbm [shape: f32[256,128], index: 0, kind: input, shape index: {}]
  %s1 = inlined_call_operand.vmem [shape: s32[4,1,64], index: 1, kind: input, shape index: {}]
  %s2 = inlined_call_operand.vmem [shape: f32[6,128], index: 2, kind: input, shape index: {}]
  %s3 = inlined_call_operand.vmem [shape: f32[6,1], index: 3, kind: input, shape index: {}]
  %s4 = inlined_call_operand.vmem [shape: f32[2,1,1], index: 4, kind: output, shape index: {}]
  %s5 = sld [smem:[#allocation0]]
  $region57: #{tpu_custom_call.1} parent=0
    _
  %s7 = ssub.s32 1, %s5
  %s8 = scalar_select 0, %s7, %s5
  $region1: #{tpu_custom_call.1} parent=0
    #allocation2 [shape = 'u8[65536]{0}', space=vmem, size = 0x10000, scoped, tag = 'input window, operand 0']
    #allocation3 [shape = 's32[2]{0}', space=sflag, size = 0x8, scoped, tag = 'scoped memory for tpu_custom_call.1']
    %9 = vsyncpa [#allocation3], 0
    %s10 = scalar_lea.sflag [#allocation3], 1
    %11 = vsyncpa %s10, 0
    loop: start=0, step=1, limit=6
    $region2: #{tpu_custom_call.1} parent=1 // loop_pre_header
      _
    $region3: #{tpu_custom_call.1} parent=1 // loop_header
      %s13 = sphi 0, %s17
      %p14 = scmp.ge.s32.totalorder %s13, 6
      %s20 = sphi 0, %s32
      %s21 = sphi 0, %s28
      %s22 = sphi 0, %s20
      %s23 = sphi 0, %s21
      %s24 = sphi 0, %s22
      %s25 = sphi 0, %s23
      %s39 = sphi 0, %s41
      %s42 = sphi 0, %s39
      %s43 = sphi 0, %s42
      %s59 = sphi 0, %s43
      %s69 = sphi 0, %s71
      %s72 = sphi 0, %s69
      %s73 = sphi 0, %s72
      %s89 = sphi 0, %s73
      %s93 = sphi 0, %s93
      %s95 = sphi 0, %s93
      %s96 = sphi 0, %s95
      %s110 = sphi 0, %s96
      %s114 = sphi 0, %s114
      %s116 = sphi 0, %s114
      %s117 = sphi 0, %s116
      %s131 = sphi 0, %s117
      %s137 = sphi 0, %s139
      %s140 = sphi 0, %s137
      %s141 = sphi 0, %s140
      %s157 = sphi 0, %s141
    $region4: #{tpu_custom_call.1} parent=1 // loop_header_branch
      %16 = sbr.rel (%p14) target = $region8
    $region5: #{tpu_custom_call.1} parent=1 // loop_body
      %s18 = ssub.s32 %s13, 1
      %s19 = ssub.s32 %s13, 2
      %s26 = sadd.s32 1, %s21
      %p27 = scmp.ge.s32.totalorder %s26, 2
      %s28 = scalar_select %p27, 0, %s26
      %s29 = sadd.s32 1, %s20
      %s30 = scalar_select %p27, %s29, %s20
      %p31 = scmp.ge.s32.totalorder %s30, 2
      %s32 = scalar_select %p31, 0, %s30
      %s33 = smul.u32 %s20, 2
      %s34 = sadd.s32 %s33, %s21
      %s35 = smul.u32 %s32, 2
      %s36 = sadd.s32 %s35, %s28
      %s37 = ssub.s32 %s34, %s36
      %p38 = scmp.eq.s32.totalorder %s37, 0
      %s40 = sadd.s32 %s39, 1
      %s41 = scalar_select %p38, %s39, %s40
      %p44 = pneg %p38
      %p45 = scmp.eq.s32.totalorder %s13, 3
      %p46 = por %p44, %p45
      %p47 = scmp.ne.s32.totalorder %s39, %s42
      %p48 = scmp.eq.s32.totalorder %s13, 0
      %p49 = por %p47, %p48
      %p50 = scmp.ne.s32.totalorder %s39, %s42
      %p51 = scmp.eq.s32.totalorder %s18, 3
      %p52 = por %p50, %p51
      %p53 = scmp.ne.s32.totalorder %s42, %s43
      %p54 = scmp.eq.s32.totalorder %s18, 0
      %p55 = por %p53, %p54
      %p56 = scmp.ne.s32.totalorder %s42, %s43
      %p57 = scmp.eq.s32.totalorder %s19, 3
      %p58 = por %p56, %p57
      %p60 = scmp.ne.s32.totalorder %s43, %s59
      %p61 = scmp.eq.s32.totalorder %s19, 0
      %p62 = por %p60, %p61
      %s63 = smul.u32 %s20, 2
      %s64 = sadd.s32 %s63, %s21
      %s65 = smul.u32 %s32, 2
      %s66 = sadd.s32 %s65, %s28
      %s67 = ssub.s32 %s64, %s66
      %p68 = scmp.eq.s32.totalorder %s67, 0
      %s70 = sadd.s32 %s69, 1
      %s71 = scalar_select %p68, %s69, %s70
      %p74 = pneg %p68
      %p75 = scmp.eq.s32.totalorder %s13, 3
      %p76 = por %p74, %p75
      %p77 = scmp.ne.s32.totalorder %s69, %s72
      %p78 = scmp.eq.s32.totalorder %s13, 0
      %p79 = por %p77, %p78
      %p80 = scmp.ne.s32.totalorder %s69, %s72
      %p81 = scmp.eq.s32.totalorder %s18, 3
      %p82 = por %p80, %p81
      %p83 = scmp.ne.s32.totalorder %s72, %s73
      %p84 = scmp.eq.s32.totalorder %s18, 0
      %p85 = por %p83, %p84
      %p86 = scmp.ne.s32.totalorder %s72, %s73
      %p87 = scmp.eq.s32.totalorder %s19, 3
      %p88 = por %p86, %p87
      %p90 = scmp.ne.s32.totalorder %s73, %s89
      %p91 = scmp.eq.s32.totalorder %s19, 0
      %p92 = por %p90, %p91
      %s94 = sadd.s32 %s93, 1
      %p97 = scmp.eq.s32.totalorder %s13, 3
      %p98 = scmp.ne.s32.totalorder %s93, %s95
      %p99 = scmp.eq.s32.totalorder %s13, 0
      %p100 = por %p98, %p99
      %p101 = scmp.ne.s32.totalorder %s93, %s95
      %p102 = scmp.eq.s32.totalorder %s18, 3
      %p103 = por %p101, %p102
      %p104 = scmp.ne.s32.totalorder %s95, %s96
      %p105 = scmp.eq.s32.totalorder %s18, 0
      %p106 = por %p104, %p105
      %p107 = scmp.ne.s32.totalorder %s95, %s96
      %p108 = scmp.eq.s32.totalorder %s19, 3
      %p109 = por %p107, %p108
      %p111 = scmp.ne.s32.totalorder %s96, %s110
      %p112 = scmp.eq.s32.totalorder %s19, 0
      %p113 = por %p111, %p112
      %s115 = sadd.s32 %s114, 1
      %p118 = scmp.eq.s32.totalorder %s13, 3
      %p119 = scmp.ne.s32.totalorder %s114, %s116
      %p120 = scmp.eq.s32.totalorder %s13, 0
      %p121 = por %p119, %p120
      %p122 = scmp.ne.s32.totalorder %s114, %s116
      %p123 = scmp.eq.s32.totalorder %s18, 3
      %p124 = por %p122, %p123
      %p125 = scmp.ne.s32.totalorder %s116, %s117
      %p126 = scmp.eq.s32.totalorder %s18, 0
      %p127 = por %p125, %p126
      %p128 = scmp.ne.s32.totalorder %s116, %s117
      %p129 = scmp.eq.s32.totalorder %s19, 3
      %p130 = por %p128, %p129
      %p132 = scmp.ne.s32.totalorder %s117, %s131
      %p133 = scmp.eq.s32.totalorder %s19, 0
      %p134 = por %p132, %p133
      %s135 = ssub.s32 %s20, %s32
      %p136 = scmp.eq.s32.totalorder %s135, 0
      %s138 = sadd.s32 %s137, 1
      %s139 = scalar_select %p136, %s137, %s138
      %p142 = pneg %p136
      %p143 = scmp.eq.s32.totalorder %s13, 3
      %p144 = por %p142, %p143
      %p145 = scmp.ne.s32.totalorder %s137, %s140
      %p146 = scmp.eq.s32.totalorder %s13, 0
      %p147 = por %p145, %p146
      %p148 = scmp.ne.s32.totalorder %s137, %s140
      %p149 = scmp.eq.s32.totalorder %s18, 3
      %p150 = por %p148, %p149
      %p151 = scmp.ne.s32.totalorder %s140, %s141
      %p152 = scmp.eq.s32.totalorder %s18, 0
      %p153 = por %p151, %p152
      %p154 = scmp.ne.s32.totalorder %s140, %s141
      %p155 = scmp.eq.s32.totalorder %s19, 3
      %p156 = por %p154, %p155
      %p158 = scmp.ne.s32.totalorder %s141, %s157
      %p159 = scmp.eq.s32.totalorder %s19, 0
      %p160 = por %p158, %p159
      %p161 = scmp.le.s32.totalorder 1, %s13
      %p162 = scmp.lt.s32.totalorder %s13, 5
      %p163 = pnand %p161, %p162
      %p164 = pneg %p163
      // Predicated region
      $region9: #{tpu_custom_call.1} parent=5 // pred_check
        _
      $region10: #{tpu_custom_call.1} parent=5 // pred_check_branch
        %166 = sbr.rel (%p163) target = $region12
      $region11: #{tpu_custom_call.1} parent=5 // pred_region
        %s167 = ssub.s32 %s13, 1
        // Predicated region
        $region13: #{tpu_custom_call.1} parent=11 // pred_check
          %p168 = pneg %p106
        $region14: #{tpu_custom_call.1} parent=11 // pred_check_branch
          %170 = sbr.rel (%p168) target = $region16
        $region15: #{tpu_custom_call.1} parent=11 // pred_region
          _
        $region16: #{tpu_custom_call.1} parent=11 // pred_fallthru
          _
        // Predicated region
        $region17: #{tpu_custom_call.1} parent=11 // pred_check
          %p171 = pneg %p127
        $region18: #{tpu_custom_call.1} parent=11 // pred_check_branch
          %173 = sbr.rel (%p171) target = $region20
        $region19: #{tpu_custom_call.1} parent=11 // pred_region
          _
        $region20: #{tpu_custom_call.1} parent=11 // pred_fallthru
          _
      $region12: #{tpu_custom_call.1} parent=5 // pred_fallthru
        _
      %p174 = scmp.lt.s32.totalorder %s13, 4
      // Predicated region
      $region21: #{tpu_custom_call.1} parent=5 // pred_check
        %p175 = pneg %p174
      $region22: #{tpu_custom_call.1} parent=5 // pred_check_branch
        %177 = sbr.rel (%p175) target = $region24
      $region23: #{tpu_custom_call.1} parent=5 // pred_region
        // Predicated region
        $region25: #{tpu_custom_call.1} parent=23 // pred_check
          %p178 = pneg %p49
        $region26: #{tpu_custom_call.1} parent=23 // pred_check_branch
          %180 = sbr.rel (%p178) target = $region28
        $region27: #{tpu_custom_call.1} parent=23 // pred_region
          %s181 = sand.u32 %s39, 1
          %s182 = scalar_lea.sflag [#allocation3], %s181
          %s183 = sand.u32 %s39, 1
          %s184 = smul.addr %s183, 64
          %s185 = scalar_lea.vmem [#allocation2], %s184
          %s186 = smul.u32 %s20, 2
          %s187 = sadd.s32 %s186, %s21
          %s188 = smul.u32 8, %s187
          %s190 = ssub.s32 1024, 1024
          %191 = vsyncadd %s182, %s190
          %s192 = smul.addr %s188, 128
          %s193 = scalar_lea.hbm %s0, %s192
          %s194 = sshll.u32 %s185, 4
          %s195 = int_to_ptr.vmem [resolvable:$true] %s194
          %200 = dma.hbm_to_vmem [thread:$0]  %s193, 1024, %s195, %s182, 128, 128, 8
        $region28: #{tpu_custom_call.1} parent=23 // pred_fallthru
          _
        // Predicated region
        $region29: #{tpu_custom_call.1} parent=23 // pred_check
          %p201 = pneg %p79
        $region30: #{tpu_custom_call.1} parent=23 // pred_check_branch
          %203 = sbr.rel (%p201) target = $region32
        $region31: #{tpu_custom_call.1} parent=23 // pred_region
          %s204 = smul.u32 %s20, 2
          %s205 = sadd.s32 %s204, %s21
          %p206 = scmp.lt.s32.totalorder %s205, 3
          %s207 = scalar_select %p206, %s205, 3
          %s208 = scalar_lea.vmem %s1, %s207
          %s209 = smul.u32 %s20, 2
          %s210 = sadd.s32 %s209, %s21
        $region32: #{tpu_custom_call.1} parent=23 // pred_fallthru
          _
      $region24: #{tpu_custom_call.1} parent=5 // pred_fallthru
        _
      %p211 = scmp.le.s32.totalorder 1, %s13
      %p212 = scmp.lt.s32.totalorder %s13, 5
      %p213 = pnand %p211, %p212
      %p214 = pneg %p213
      // Predicated region
      $region33: #{tpu_custom_call.1} parent=5 // pred_check
        _
      $region34: #{tpu_custom_call.1} parent=5 // pred_check_branch
        %216 = sbr.rel (%p213) target = $region36
      $region35: #{tpu_custom_call.1} parent=5 // pred_region
        %s217 = ssub.s32 %s13, 1
        %s218 = sand.u32 %s42, 1
        %s219 = scalar_lea.sflag [#allocation3], %s218
        %s220 = sand.u32 %s42, 1
        %s221 = smul.addr %s220, 64
        %s222 = scalar_lea.vmem [#allocation2], %s221
        // Predicated region
        $region37: #{tpu_custom_call.1} parent=35 // pred_check
          %p223 = pneg %p55
        $region38: #{tpu_custom_call.1} parent=35 // pred_check_branch
          %225 = sbr.rel (%p223) target = $region40
        $region39: #{tpu_custom_call.1} parent=35 // pred_region
          %226 = dma.done %s219, 1024
        $region40: #{tpu_custom_call.1} parent=35 // pred_fallthru
          _
        %s227 = sand.u32 %s42, 1
        %s228 = scalar_lea.sflag [#allocation3], %s227
        %s229 = sand.u32 %s42, 1
        %s230 = smul.addr %s229, 64
        %s231 = scalar_lea.vmem [#allocation2], %s230
        %p232 = pneg %p55
        %p233 = pneg %p52
        %s234 = smul.u32 %s22, 2
        %s235 = sadd.s32 %s234, %s23
        %p236 = scmp.lt.s32.totalorder %s235, 3
        %s237 = scalar_select %p236, %s235, 3
        %s238 = scalar_lea.vmem %s1, %s237
        %p239 = pneg %p85
        %p240 = pneg %p82
        %p241 = pneg %p106
        %p242 = pneg %p103
        %p243 = pneg %p127
        %p244 = pneg %p124
        %p245 = pneg %p153
        %p246 = pneg %p150
        %p247 = scmp.lt.s32.totalorder %s22, 1
        %s248 = scalar_select %p247, %s22, 1
        %s249 = scalar_lea.vmem %s4, %s248
        %s250 = smul.u32 %s22, 2
        %s251 = sadd.s32 %s250, %s23
        %s252 = smul.u32 8, %s251
        %s253 = smul.u32 %s22, 2
        %s254 = sadd.s32 %s253, %s23
        %p255 = scmp.lt.s32.totalorder %s254, 3
        %s256 = scalar_select %p255, %s254, 3
        %s257 = scalar_lea.vmem %s1, %s256
        %s258 = smul.u32 %s22, 2
        %s259 = sadd.s32 %s258, %s23
        %p260 = scmp.lt.s32.totalorder %s22, 1
        %s261 = scalar_select %p260, %s22, 1
        %s262 = scalar_lea.vmem %s4, %s261
        %p263 = scmp.eq.s32.totalorder %s23, 0
        // Predicated region
        $region41: #{tpu_custom_call.1} parent=35 // pred_check
          %p264 = pneg %p263
        $region42: #{tpu_custom_call.1} parent=35 // pred_check_branch
          %266 = sbr.rel (%p264) target = $region44
        $region43: #{tpu_custom_call.1} parent=35 // pred_region
          %vm267 = vcmask 0
          %268 = vst.msk [vmem:[%s262] sm:$0x1] %vm267, 0.0
        $region44: #{tpu_custom_call.1} parent=35 // pred_fallthru
          _
        %v269 = vld [vmem:[%s222] sm:$0xff]
        %v270 = vld [vmem:[%s222 + $0x8] sm:$0xff]
        %v271 = vld [vmem:[%s222 + $0x10] sm:$0xff]
        %v272 = vld [vmem:[%s222 + $0x18] sm:$0xff]
        %v273 = vld [vmem:[%s222 + $0x20] sm:$0xff]
        %v274 = vld [vmem:[%s222 + $0x28] sm:$0xff]
        %v275 = vld [vmem:[%s222 + $0x30] sm:$0xff]
        %v276 = vld [vmem:[%s222 + $0x38] sm:$0xff]
        %v277 = vld [vmem:[%s2] sm:$0x3f]
        %v278 = vld [vmem:[%s257] sm:$0x1]
        %v279 = vld [vmem:[%s3] sm:$0x3f]
        %280 = vmatprep.subr.mxu0 0.0
        %281 = vmatpush1.xpose.msra.mxu0 %v269
        %282 = vmatprep.subr.mxu0 0.0
        %283 = vmatpush1.xpose.msra.mxu0 %v270
        %284 = vmatprep.subr.mxu0 0.0
        %285 = vmatpush1.xpose.msra.mxu0 %v271
        %286 = vmatprep.subr.mxu0 0.0
        %287 = vmatpush1.xpose.msra.mxu0 %v272
        %288 = vmatprep.subr.mxu0 0.0
        %289 = vmatpush1.xpose.msra.mxu0 %v273
        %290 = vmatprep.subr.mxu0 0.0
        %291 = vmatpush1.xpose.msra.mxu0 %v274
        %292 = vmatprep.subr.mxu0 0.0
        %293 = vmatpush1.xpose.msra.mxu0 %v275
        %294 = vmatprep.subr.mxu0 0.0
        %295 = vmatpush1.xpose.msra.mxu0 %v276
        %296 = vmatprep.subr.mxu0 0.0
        %297 = vmatpush1.xpose.msra.mxu0 0.0
        %298 = vmatprep.subr.mxu0 0.0
        %299 = vmatpush1.xpose.msra.mxu0 0.0
        %300 = vmatprep.subr.mxu0 0.0
        %301 = vmatpush1.xpose.msra.mxu0 0.0
        %302 = vmatprep.subr.mxu0 0.0
        %303 = vmatpush1.xpose.msra.mxu0 0.0
        %304 = vmatprep.subr.mxu0 0.0
        %305 = vmatpush1.xpose.msra.mxu0 0.0
        %306 = vmatprep.subr.mxu0 0.0
        %307 = vmatpush1.xpose.msra.mxu0 0.0
        %308 = vmatprep.subr.mxu0 0.0
        %309 = vmatpush1.xpose.msra.mxu0 0.0
        %310 = vmatprep.subr.mxu0 0.0
        %311 = vmatpush1.xpose.msra.mxu0 0.0
        %312 = vmatprep.subr.mxu0 0.0
        %313 = vmatpush1.xpose.msra.mxu0 0.0
        %314 = vmatprep.subr.mxu0 0.0
        %315 = vmatpush1.xpose.msra.mxu0 0.0
        %316 = vmatprep.subr.mxu0 0.0
        %317 = vmatpush1.xpose.msra.mxu0 0.0
        %318 = vmatprep.subr.mxu0 0.0
        %319 = vmatpush1.xpose.msra.mxu0 0.0
        %320 = vmatprep.subr.mxu0 0.0
        %321 = vmatpush1.xpose.msra.mxu0 0.0
        %322 = vmatprep.subr.mxu0 0.0
        %323 = vmatpush1.xpose.msra.mxu0 0.0
        %324 = vmatprep.subr.mxu0 0.0
        %325 = vmatpush1.xpose.msra.mxu0 0.0
        %326 = vmatprep.subr.mxu0 0.0
        %327 = vmatpush1.xpose.msra.mxu0 0.0
        %328 = vmatprep.subr.mxu0 0.0
        %329 = vmatpush1.xpose.msra.mxu0 0.0
        %330 = vmatprep.subr.mxu0 0.0
        %331 = vmatpush1.xpose.msra.mxu0 0.0
        %332 = vmatprep.subr.mxu0 0.0
        %333 = vmatpush1.xpose.msra.mxu0 0.0
        %334 = vmatprep.subr.mxu0 0.0
        %335 = vmatpush1.xpose.msra.mxu0 0.0
        %336 = vmatprep.subr.mxu0 0.0
        %337 = vmatpush1.xpose.msra.mxu0 0.0
        %338 = vmatprep.subr.mxu0 0.0
        %339 = vmatpush1.xpose.msra.mxu0 0.0
        %340 = vmatprep.subr.mxu0 0.0
        %341 = vmatpush1.xpose.msra.mxu0 0.0
        %342 = vmatprep.subr.mxu0 0.0
        %343 = vmatpush1.xpose.msra.mxu0 0.0
        %344 = vmatprep.mubr.f32.mxu0 0.0
        %345 = vmatmul.mubr.f32.gmra.mrb[0].mxu0 %v277
        %v346 = vpop.f32.mrb[0].mxu0
        %v347 = vadd.f32 0.0, %v346
        %v348 = vpop.f32.mrb[0].mxu0
        %349 = vdwg.mxu0
        %v350 = vmul.f32 %v269, %v269
        %v351 = vmul.f32 %v270, %v270
        %v352 = vmul.f32 %v271, %v271
        %v353 = vmul.f32 %v272, %v272
        %v354 = vmul.f32 %v273, %v273
        %v355 = vmul.f32 %v274, %v274
        %v356 = vmul.f32 %v275, %v275
        %v357 = vmul.f32 %v276, %v276
        %358 = vmatprep.subr.mxu0 0.0
        %359 = vmatpush1.xpose.msra.mxu0 %v350
        %360 = vmatprep.subr.mxu0 0.0
        %361 = vmatpush1.xpose.msra.mxu0 %v351
        %362 = vmatprep.subr.mxu0 0.0
        %363 = vmatpush1.xpose.msra.mxu0 %v352
        %364 = vmatprep.subr.mxu0 0.0
        %365 = vmatpush1.xpose.msra.mxu0 %v353
        %366 = vmatprep.subr.mxu0 0.0
        %367 = vmatpush1.xpose.msra.mxu0 %v354
        %368 = vmatprep.subr.mxu0 0.0
        %369 = vmatpush1.xpose.msra.mxu0 %v355
        %370 = vmatprep.subr.mxu0 0.0
        %371 = vmatpush1.xpose.msra.mxu0 %v356
        %372 = vmatprep.subr.mxu0 0.0
        %373 = vmatpush1.xpose.msra.mxu0 %v357
        %374 = vmatprep.subr.mxu0 0.0
        %375 = vmatpush1.xpose.msra.mxu0 0.0
        %376 = vmatprep.subr.mxu0 0.0
        %377 = vmatpush1.xpose.msra.mxu0 0.0
        %378 = vmatprep.subr.mxu0 0.0
        %379 = vmatpush1.xpose.msra.mxu0 0.0
        %380 = vmatprep.subr.mxu0 0.0
        %381 = vmatpush1.xpose.msra.mxu0 0.0
        %382 = vmatprep.subr.mxu0 0.0
        %383 = vmatpush1.xpose.msra.mxu0 0.0
        %384 = vmatprep.subr.mxu0 0.0
        %385 = vmatpush1.xpose.msra.mxu0 0.0
        %386 = vmatprep.subr.mxu0 0.0
        %387 = vmatpush1.xpose.msra.mxu0 0.0
        %388 = vmatprep.subr.mxu0 0.0
        %389 = vmatpush1.xpose.msra.mxu0 0.0
        %390 = vmatprep.subr.mxu0 0.0
        %391 = vmatpush1.xpose.msra.mxu0 0.0
        %392 = vmatprep.subr.mxu0 0.0
        %393 = vmatpush1.xpose.msra.mxu0 0.0
        %394 = vmatprep.subr.mxu0 0.0
        %395 = vmatpush1.xpose.msra.mxu0 0.0
        %396 = vmatprep.subr.mxu0 0.0
        %397 = vmatpush1.xpose.msra.mxu0 0.0
        %398 = vmatprep.subr.mxu0 0.0
        %399 = vmatpush1.xpose.msra.mxu0 0.0
        %400 = vmatprep.subr.mxu0 0.0
        %401 = vmatpush1.xpose.msra.mxu0 0.0
        %402 = vmatprep.subr.mxu0 0.0
        %403 = vmatpush1.xpose.msra.mxu0 0.0
        %404 = vmatprep.subr.mxu0 0.0
        %405 = vmatpush1.xpose.msra.mxu0 0.0
        %406 = vmatprep.subr.mxu0 0.0
        %407 = vmatpush1.xpose.msra.mxu0 0.0
        %408 = vmatprep.subr.mxu0 0.0
        %409 = vmatpush1.xpose.msra.mxu0 0.0
        %410 = vmatprep.subr.mxu0 0.0
        %411 = vmatpush1.xpose.msra.mxu0 0.0
        %412 = vmatprep.subr.mxu0 0.0
        %413 = vmatpush1.xpose.msra.mxu0 0.0
        %414 = vmatprep.subr.mxu0 0.0
        %415 = vmatpush1.xpose.msra.mxu0 0.0
        %416 = vmatprep.subr.mxu0 0.0
        %417 = vmatpush1.xpose.msra.mxu0 0.0
        %418 = vmatprep.subr.mxu0 0.0
        %419 = vmatpush1.xpose.msra.mxu0 0.0
        %420 = vmatprep.subr.mxu0 0.0
        %421 = vmatpush1.xpose.msra.mxu0 0.0
        %422 = vmatprep.mubr.f32.mxu0 0.0
        %423 = vmatmul.mubr.f32.gmra.mrb[0].mxu0 1.0
        %v424 = vpop.f32.mrb[0].mxu0
        %v425 = vadd.f32 0.0, %v424
        %v426 = vpop.f32.mrb[0].mxu0
        %427 = vdwg.mxu0
        %429 = vset.pattern.permute.xlu0 0
        %430 = vperm.xlu0 %429, %v279
        %v431 = vpop.permute.xlu0 %430
        %v433 = vlaneseq
        %v434 = vshrl.u32 %v433, 7
        %v435 = vsub.s32 0, %v434
        %v436 = vrot.slane %v425, %v435
        %v437 = vadd.f32 %v431, %v436
        %v438 = vmul.f32 %v347, 2.0
        %v439 = vsub.f32 %v437, %v438
        %v440 = vlaneseq
        %v441 = vshrl.u32 %v440, 7
        %v442 = vlaneseq
        %v443 = vshrl.u32 %v442, 7
        %v444 = vsub.s32 0, %v443
        %v445 = vrot.slane %v278, %v444
        %vm446 = vcmp.eq.s32.totalorder %v445, %v441
        %v447 = vsel %vm446, 1, 0
        %v448 = vcvt.s32.f32 %v447
        %v449 = vmul.f32 %v439, %v448
        %v450 = vmax.f32 %v449, 1e-12
        %v451 = vmin.f32 %v450, 1e+12
        %vm452 = vcmask 521216
        %v453 = vsel %vm452, %v451, 0.0
        %454 = vadd.xlane.f32.xlu0 %v453
        %v455 = vpop.xlane.xlu0 %454
        %vm456 = vcmask 1045504
        %v457 = vsel %vm456, %v455, 0.0
        %v458 = vrot.slane %v457, 4
        %v459 = vadd.f32 %v457, %v458
        %v460 = vrot.slane %v459, 2
        %v461 = vadd.f32 %v459, %v460
        %v462 = vrot.slane %v461, 1
        %v463 = vadd.f32 %v461, %v462
        %v464 = vld [vmem:[%s262] sm:$0x1]
        %v465 = vadd.f32 %v464, %v463
        %vm466 = vcmask 0
        %467 = vst.msk [vmem:[%s262] sm:$0x1] %vm466, %v465
        %p468 = scmp.lt.s32.totalorder %s22, 1
        %s469 = scalar_select %p468, %s22, 1
        %s470 = scalar_lea.vmem %s4, %s469
        // Predicated region
        $region45: #{tpu_custom_call.1} parent=35 // pred_check
          %p471 = pneg %p150
        $region46: #{tpu_custom_call.1} parent=35 // pred_check_branch
          %473 = sbr.rel (%p471) target = $region48
        $region47: #{tpu_custom_call.1} parent=35 // pred_region
          _
        $region48: #{tpu_custom_call.1} parent=35 // pred_fallthru
          _
      $region36: #{tpu_custom_call.1} parent=5 // pred_fallthru
        _
      %p474 = scmp.le.s32.totalorder 2, %s13
      // Predicated region
      $region49: #{tpu_custom_call.1} parent=5 // pred_check
        %p475 = pneg %p474
      $region50: #{tpu_custom_call.1} parent=5 // pred_check_branch
        %477 = sbr.rel (%p475) target = $region52
      $region51: #{tpu_custom_call.1} parent=5 // pred_region
        %s478 = ssub.s32 %s13, 2
        // Predicated region
        $region53: #{tpu_custom_call.1} parent=51 // pred_check
          %p479 = pneg %p156
        $region54: #{tpu_custom_call.1} parent=51 // pred_check_branch
          %481 = sbr.rel (%p479) target = $region56
        $region55: #{tpu_custom_call.1} parent=51 // pred_region
          %p482 = scmp.lt.s32.totalorder %s24, 1
          %s483 = scalar_select %p482, %s24, 1
          %s484 = scalar_lea.vmem %s4, %s483
        $region56: #{tpu_custom_call.1} parent=51 // pred_fallthru
          _
      $region52: #{tpu_custom_call.1} parent=5 // pred_fallthru
        _
    $region6: #{tpu_custom_call.1} parent=1 // loop_footer
      %s17 = sadd.s32 1, %s13
    $region7: #{tpu_custom_call.1} parent=1 // loop_footer_branch
      %12 = sbr.rel target = $region3
    $region8: #{tpu_custom_call.1} parent=1 // loop_exit
      _
    %485 = vsyncpa [#allocation3], 1
    %s486 = scalar_lea.sflag [#allocation3], 1
    %487 = vsyncpa %s486, 1

</llo_original>
